<compile_context>
chip_gen: v7x
topology: tpu7x:2x2x1
jax: 0.10.0
libtpu: 0.0.40
codegen_flags: <defaults>
</compile_context>

<pallas_src>
import functools
import math

import jax
import jax.numpy as jnp
from jax.experimental import pallas as pl
from jax.experimental.pallas import tpu as pltpu

_LN_EPS = 1e-5
# Finite stand-in for torch's -inf masked_fill; identical softmax result for any
# row with at least one unmasked key (fully-masked rows give uniform attention
# instead of NaN -- documented deviation).
_NEG_INF = -1e30
_PREC = jax.lax.Precision.HIGHEST


# --------------------------------------------------------------------------
# helpers
# --------------------------------------------------------------------------

def _pick_tile(dim, target, min_tile):
    """Largest power-of-two tile <= target that divides dim; else the full dim."""
    if dim <= target:
        return dim
    t = target
    while t >= min_tile:
        if dim % t == 0:
            return t
        t //= 2
    return dim


# --------------------------------------------------------------------------
# Tiled matmul kernel (q_net / kv_net / r_net / o_net projections)
# --------------------------------------------------------------------------

def _matmul_kernel(x_ref, w_ref, o_ref, acc_ref):
    @pl.when(pl.program_id(2) == 0)
    def _():
        acc_ref[...] = jnp.zeros_like(acc_ref)

    acc_ref[...] += jnp.dot(x_ref[...], w_ref[...],
                            preferred_element_type=jnp.float32)

    @pl.when(pl.program_id(2) == pl.num_programs(2) - 1)
    def _():
        o_ref[...] = acc_ref[...].astype(o_ref.dtype)


def pallas_matmul(x, w, *, tm=256, tn=512, tk=512):
    """x: [M, K] @ w: [K, N] -> [M, N], tiled + software pipelined."""
    M, K = x.shape
    K2, N = w.shape
    assert K == K2
    # Pad rows to a multiple of 128 so the MXU row dimension never collapses to
    # an 8-row tile (perf review: keep the systolic array rows full).
    Mp = ((M + 127) // 128) * 128
    if Mp != M:
        x = jnp.pad(x, ((0, Mp - M), (0, 0)))
    tm = min(tm, Mp)
    if Mp % tm:
        tm = 128
    tn = _pick_tile(N, tn, 128)
    tk = _pick_tile(K, tk, 128)
    out = pl.pallas_call(
        _matmul_kernel,
        out_shape=jax.ShapeDtypeStruct((Mp, N), x.dtype),
        grid_spec=pltpu.PrefetchScalarGridSpec(
            num_scalar_prefetch=0,
            grid=(Mp // tm, N // tn, K // tk),
            in_specs=[pl.BlockSpec((tm, tk), lambda i, j, k: (i, k)),
                      pl.BlockSpec((tk, tn), lambda i, j, k: (k, j))],
            out_specs=pl.BlockSpec((tm, tn), lambda i, j, k: (i, j)),
            scratch_shapes=[pltpu.VMEM((tm, tn), jnp.float32)]),
        compiler_params=pltpu.CompilerParams(
            dimension_semantics=("parallel", "parallel", "arbitrary")),
    )(x, w)
    return out[:M] if Mp != M else out


# --------------------------------------------------------------------------
# LayerNorm kernels (row-tiled; with / without residual add)
# --------------------------------------------------------------------------

def _ln_kernel(x_ref, g_ref, b_ref, o_ref, *, eps):
    x = x_ref[...].astype(jnp.float32)
    mu = jnp.mean(x, axis=-1, keepdims=True)
    var = jnp.mean(jnp.square(x - mu), axis=-1, keepdims=True)
    y = (x - mu) * jax.lax.rsqrt(var + eps)
    o_ref[...] = (y * g_ref[...].astype(jnp.float32)
                  + b_ref[...].astype(jnp.float32)).astype(o_ref.dtype)


def _add_ln_kernel(x_ref, r_ref, g_ref, b_ref, o_ref, *, eps):
    x = x_ref[...].astype(jnp.float32) + r_ref[...].astype(jnp.float32)
    mu = jnp.mean(x, axis=-1, keepdims=True)
    var = jnp.mean(jnp.square(x - mu), axis=-1, keepdims=True)
    y = (x - mu) * jax.lax.rsqrt(var + eps)
    o_ref[...] = (y * g_ref[...].astype(jnp.float32)
                  + b_ref[...].astype(jnp.float32)).astype(o_ref.dtype)


def _ln_call(kernel, arrays, gamma, beta, *, eps, block_rows, out_dtype):
    N, D = arrays[0].shape
    tr = _pick_tile(N, block_rows, 16)
    row_spec = pl.BlockSpec((tr, D), lambda i: (i, 0))
    vec_spec = pl.BlockSpec((1, D), lambda i: (0, 0))
    return pl.pallas_call(
        functools.partial(kernel, eps=eps),
        out_shape=jax.ShapeDtypeStruct((N, D), out_dtype),
        grid=(N // tr,),
        in_specs=[pl.BlockSpec((tr, D), lambda i: (i, 0))
                  for _ in arrays] + [vec_spec, vec_spec],
        out_specs=row_spec,
        compiler_params=pltpu.CompilerParams(dimension_semantics=("parallel",)),
    )(*arrays, gamma.reshape(1, D), beta.reshape(1, D))


def pallas_layernorm(x, gamma, beta, *, eps=_LN_EPS, block_rows=512):
    return _ln_call(_ln_kernel, [x], gamma, beta, eps=eps,
                    block_rows=block_rows, out_dtype=x.dtype)


def pallas_add_layernorm(x, resid, gamma, beta, *, eps=_LN_EPS, block_rows=512,
                         out_dtype=None):
    return _ln_call(_add_ln_kernel, [x, resid], gamma, beta, eps=eps,
                    block_rows=block_rows,
                    out_dtype=out_dtype or resid.dtype)


# --------------------------------------------------------------------------
# Fused relative-position attention kernel
# --------------------------------------------------------------------------

def _roll_rows_left_varying(x, shifts, max_shift):
    """Circularly roll row r of x left by shifts[r] (0 <= shifts[r] <= max_shift).

    Barrel-shifter decomposition: ceil(log2(max_shift + 1)) static steps, each a
    lane slice+concat plus a per-row select -- no gathers, no strided rotate.
    """
    n = x.shape[-1]
    y = x
    b = 1
    while b <= max_shift:
        a = b % n
        rolled = jnp.concatenate([y[:, a:], y[:, :a]], axis=-1) if a else y
        y = jnp.where((shifts & b) != 0, rolled, y)
        b <<= 1
    return y


def _rel_attn_kernel(q_ref, qn_ref, k_ref, v_ref, rk_ref, rwb_ref, rrb_ref,
                     *rest, n_head, d_head, scale, qlen, tq, has_mask,
                     approx_recip):
    # Blocks (batch b, query tile qt):
    #   q   [1, tq, Hd]     qn  [1, tq, Hd]  (next query tile, for the wrap row)
    #   k/v [1, K, Hd]      rk  [K, Hd]      rwb/rrb [1, Hd]
    #   (mask bias [1, tq, K])               out [1, tq, Hd]
    if has_mask:
        m_ref, o_ref = rest
    else:
        (o_ref,) = rest
    qt = pl.program_id(1)
    klen = k_ref.shape[1]

    # Global query indices of this tile plus one extra row (first row of the
    # next tile) -- the exact torch _rel_shift wraps into the next query row.
    row = qt * tq + jax.lax.broadcasted_iota(jnp.int32, (tq + 1, 1), 0)
    shifts = jnp.maximum(qlen - 1 - row, 0)            # [tq+1, 1]
    s_main = shifts[:tq]                               # [tq, 1]
    col = jax.lax.broadcasted_iota(jnp.int32, (tq, klen), 1)
    in_range = col <= (klen - 1) - s_main              # un-wrapped region
    at_zero = col == klen - s_main                     # the injected zero column

    mask_bias = m_ref[0].astype(jnp.float32) if has_mask else None

    for h in range(n_head):                            # static unroll over heads
        sl = slice(h * d_head, (h + 1) * d_head)
        q_h = q_ref[0, :, sl].astype(jnp.float32)      # [tq, dh]
        qn_h = qn_ref[0, 0:1, sl].astype(jnp.float32)  # [1, dh]
        rwb_h = rwb_ref[0:1, sl].astype(jnp.float32)   # [1, dh]
        rrb_h = rrb_ref[0:1, sl].astype(jnp.float32)
        k_h = k_ref[0, :, sl]                          # [K, dh]
        v_h = v_ref[0, :, sl]
        rk_h = rk_ref[:, sl]                           # [K, dh]

        # AC term: scale and r_w_bias folded into Q once; contract last dims
        # (no explicit K transpose).
        q_ac = ((q_h + rwb_h) * scale).astype(k_h.dtype)
        ac = jax.lax.dot_general(q_ac, k_h, (((1,), (1,)), ((), ())),
                                 preferred_element_type=jnp.float32)   # [tq, K]

        # BD term (with one extra query row) + exact in-kernel rel-shift.
        q_bd = ((jnp.concatenate([q_h, qn_h], axis=0) + rrb_h) * scale
                ).astype(rk_h.dtype)                                   # [tq+1, dh]
        bd = jax.lax.dot_general(q_bd, rk_h, (((1,), (1,)), ((), ())),
                                 preferred_element_type=jnp.float32)   # [tq+1, K]
        rolled = _roll_rows_left_varying(bd, shifts, qlen - 1)
        bias = jnp.where(in_range, rolled[:tq],
                         jnp.where(at_zero, 0.0, rolled[1:]))          # [tq, K]

        s = ac + bias
        if has_mask:
            s = s + mask_bias
        m = jnp.max(s, axis=-1, keepdims=True)
        p = jnp.exp(s - m)
        denom = jnp.sum(p, axis=-1, keepdims=True)
        p = p * pl.reciprocal(denom, approx=approx_recip)
        o = jnp.dot(p.astype(v_h.dtype), v_h, preferred_element_type=jnp.float32)
        # Per-head slab write into the (lane-dense) output block.
        o_ref[0, :, sl] = o.astype(o_ref.dtype)


def pallas_rel_attention(q_b, k_b, v_b, r_head_k, rwb_row, rrb_row, mask_bias, *,
                         n_head, d_head, scale, qlen, q_tile=128):
    B, S, Hd = q_b.shape
    klen = k_b.shape[1]
    tq = _pick_tile(S, q_tile, 16)
    nqt = S // tq
    has_mask = mask_bias is not None
    approx = q_b.dtype == jnp.bfloat16

    kernel = functools.partial(
        _rel_attn_kernel, n_head=n_head, d_head=d_head, scale=scale,
        qlen=qlen, tq=tq, has_mask=has_mask, approx_recip=approx)

    q_spec = pl.BlockSpec((1, tq, Hd), lambda b, t: (b, t, 0))
    qn_spec = pl.BlockSpec((1, tq, Hd),
                           lambda b, t: (b, jnp.minimum(t + 1, nqt - 1), 0))
    kv_spec = pl.BlockSpec((1, klen, Hd), lambda b, t: (b, 0, 0))
    in_specs = [q_spec, qn_spec, kv_spec, kv_spec,
                pl.BlockSpec((klen, Hd), lambda b, t: (0, 0)),
                pl.BlockSpec((1, Hd), lambda b, t: (0, 0)),
                pl.BlockSpec((1, Hd), lambda b, t: (0, 0))]
    args = [q_b, q_b, k_b, v_b, r_head_k, rwb_row, rrb_row]
    if has_mask:
        if mask_bias.shape[0] == 1:
            in_specs.append(pl.BlockSpec((1, tq, klen), lambda b, t: (0, t, 0)))
        else:
            in_specs.append(pl.BlockSpec((1, tq, klen), lambda b, t: (b, t, 0)))
        args.append(mask_bias)

    return pl.pallas_call(
        kernel,
        out_shape=jax.ShapeDtypeStruct((B, S, Hd), q_b.dtype),
        grid=(B, nqt),
        in_specs=in_specs,
        out_specs=pl.BlockSpec((1, tq, Hd), lambda b, t: (b, t, 0)),
        compiler_params=pltpu.CompilerParams(
            dimension_semantics=("parallel", "parallel")),
    )(*args)


def _mask_to_bias(attn_mask, dtype=jnp.bfloat16):
    am = attn_mask.astype(bool)
    if am.ndim == 2:            # [qlen, klen] broadcast over batch & head
        mb = jnp.where(am, _NEG_INF, 0.0)[None]
    elif am.ndim == 3:          # [qlen, klen, bsz(or 1)] broadcast over head
        mb = jnp.where(jnp.transpose(am, (2, 0, 1)), _NEG_INF, 0.0)
    else:
        raise ValueError("attn_mask must be 2-D or 3-D")
    return mb.astype(dtype)


# --------------------------------------------------------------------------
# Full forward (mirrors RelPartialLearnableCrossMultiHeadAttn.forward)
# --------------------------------------------------------------------------

def rel_partial_learnable_cross_attn(in_vec, cross_vec, r, r_w_bias, r_r_bias,
                                     params, *, n_head, d_head, attn_mask=None,
                                     mems=None, pre_lnorm=False,
                                     compute_dtype=jnp.bfloat16,
                                     attn_q_tile=128):
    """in_vec/cross_vec: [qlen, bsz, d_model]; r: [rlen, d_model] (rlen == klen);
    r_w_bias / r_r_bias: [n_head, d_head]. Returns [qlen, bsz, d_model] (f32)."""
    qlen, bsz, d_model = in_vec.shape
    Hd = n_head * d_head
    scale = 1.0 / (d_head ** 0.5)
    if r.ndim == 3:             # accept [rlen, 1, d_model] like the torch module
        r = r.reshape(r.shape[0], d_model)

    if mems is not None and mems.size > 0:
        kv_src = jnp.concatenate([mems, cross_vec], axis=0)     # [klen, B, D]
    else:
        kv_src = cross_vec
    klen = kv_src.shape[0]
    rlen = r.shape[0]
    assert rlen == klen, "relative positions (rlen) must equal klen"
    assert klen >= qlen, "standard Transformer-XL setting (klen >= qlen) assumed"

    cd = jnp.dtype(compute_dtype)
    # q_net(cat)[-qlen:] == q_net(in_vec): row-wise ops, so only project in_vec.
    q_flat = in_vec.reshape(qlen * bsz, d_model)
    kv_flat = kv_src.reshape(klen * bsz, d_model)
    if pre_lnorm:
        q_flat = pallas_layernorm(q_flat, params["ln_g"], params["ln_b"])
        kv_flat = pallas_layernorm(kv_flat, params["ln_g"], params["ln_b"])

    head_q = pallas_matmul(q_flat.astype(cd), params["w_q_t"].astype(cd))
    head_kv = pallas_matmul(kv_flat.astype(cd), params["w_kv_t"].astype(cd))
    r_head_k = pallas_matmul(r.astype(cd), params["w_r_t"].astype(cd))
    head_k, head_v = jnp.split(head_kv, 2, axis=-1)

    # b-major slabs for the attention kernel.
    # TODO(synk): these transposes could be removed by expressing b-major access
    # via index_map on the [len, B, Hd] layout.
    q_b = head_q.reshape(qlen, bsz, Hd).transpose(1, 0, 2)
    k_b = head_k.reshape(klen, bsz, Hd).transpose(1, 0, 2)
    v_b = head_v.reshape(klen, bsz, Hd).transpose(1, 0, 2)

    mask_bias = _mask_to_bias(attn_mask) if attn_mask is not None else None
    rwb_row = r_w_bias.reshape(1, Hd).astype(jnp.float32)
    rrb_row = r_r_bias.reshape(1, Hd).astype(jnp.float32)

    attn_vec = pallas_rel_attention(q_b, k_b, v_b, r_head_k, rwb_row, rrb_row,
                                    mask_bias, n_head=n_head, d_head=d_head,
                                    scale=scale, qlen=qlen, q_tile=attn_q_tile)

    attn_flat = attn_vec.transpose(1, 0, 2).reshape(qlen * bsz, Hd)
    attn_out = pallas_matmul(attn_flat, params["w_o_t"].astype(cd))
    # self.drop / self.dropatt are identity (inference / p = 0).

    w_flat = in_vec.reshape(qlen * bsz, d_model)
    if pre_lnorm:
        out_flat = w_flat + attn_out.astype(w_flat.dtype)
    else:
        out_flat = pallas_add_layernorm(attn_out, w_flat, params["ln_g"],
                                        params["ln_b"], out_dtype=w_flat.dtype)
    return out_flat.reshape(qlen, bsz, d_model)


# --------------------------------------------------------------------------
# Parameters (nn.Linear init, weights stored pre-transposed [in, out])
# --------------------------------------------------------------------------

def init_params(key, n_head, d_model, d_head):
    k1, k2, k3, k4 = jax.random.split(key, 4)

    def linear_w_t(k, in_f, out_f):
        bound = 1.0 / math.sqrt(in_f)
        return jax.random.uniform(k, (in_f, out_f), jnp.float32, -bound, bound)

    Hd = n_head * d_head
    return dict(
        w_q_t=linear_w_t(k1, d_model, Hd),
        w_kv_t=linear_w_t(k2, d_model, 2 * Hd),
        w_r_t=linear_w_t(k3, d_model, Hd),
        w_o_t=linear_w_t(k4, Hd, d_model),
        ln_g=jnp.ones((d_model,), jnp.float32),
        ln_b=jnp.zeros((d_model,), jnp.float32),
    )


# --------------------------------------------------------------------------
# Pure-JAX reference (faithful mirror of the PyTorch forward)
# --------------------------------------------------------------------------

def reference(in_vec, cross_vec, r, r_w_bias, r_r_bias, params, *, n_head,
              d_head, attn_mask=None, mems=None, pre_lnorm=False):
    qlen, bsz, d_model = in_vec.shape
    if r.ndim == 3:
        r = r.reshape(r.shape[0], d_model)
    rlen = r.shape[0]
    scale = 1.0 / (d_head ** 0.5)

    def layer_norm(x):
        mu = jnp.mean(x, -1, keepdims=True)
        var = jnp.mean(jnp.square(x - mu), -1, keepdims=True)
        return (x - mu) / jnp.sqrt(var + _LN_EPS) * params["ln_g"] + params["ln_b"]

    def proj(x, w):
        return jnp.einsum('...i,io->...o', x, w, precision=_PREC)

    if mems is not None and mems.size > 0:
        cat = jnp.concatenate([mems, in_vec], axis=0)
        cross_cat = jnp.concatenate([mems, cross_vec], axis=0)
    else:
        cat, cross_cat = in_vec, cross_vec

    if pre_lnorm:
        w_in_heads = proj(layer_norm(cat), params["w_q_t"])
        w_cross_heads = proj(layer_norm(cross_cat), params["w_kv_t"])
    else:
        w_in_heads = proj(cat, params["w_q_t"])
        w_cross_heads = proj(cross_cat, params["w_kv_t"])
    r_head_k = proj(r, params["w_r_t"])

    w_head_q = w_in_heads[-qlen:]
    w_head_k, w_head_v = jnp.split(w_cross_heads, 2, axis=-1)
    klen = w_head_k.shape[0]

    w_head_q = w_head_q.reshape(qlen, bsz, n_head, d_head)
    w_head_k = w_head_k.reshape(klen, bsz, n_head, d_head)
    w_head_v = w_head_v.reshape(klen, bsz, n_head, d_head)
    r_head_k = r_head_k.reshape(rlen, n_head, d_head)

    AC = jnp.einsum('ibnd,jbnd->ijbn', w_head_q + r_w_bias, w_head_k,
                    precision=_PREC)
    BD = jnp.einsum('ibnd,jnd->ijbn', w_head_q + r_r_bias, r_head_k,
                    precision=_PREC)
    # exact torch _rel_shift on dims (0, 1)
    zero_pad = jnp.zeros((qlen, 1) + BD.shape[2:], BD.dtype)
    BD_p = jnp.concatenate([zero_pad, BD], axis=1)
    BD_p = BD_p.reshape((rlen + 1, qlen) + BD.shape[2:])
    BD = BD_p[1:].reshape(BD.shape)

    attn_score = (AC + BD) * scale
    if attn_mask is not None:
        am = attn_mask.astype(bool)
        if am.ndim == 2:
            attn_score = jnp.where(am[:, :, None, None], _NEG_INF, attn_score)
        else:
            attn_score = jnp.where(am[:, :, :, None], _NEG_INF, attn_score)
    attn_prob = jax.nn.softmax(attn_score, axis=1)
    attn_vec = jnp.einsum('ijbn,jbnd->ibnd', attn_prob, w_head_v, precision=_PREC)
    attn_vec = attn_vec.reshape(qlen, bsz, n_head * d_head)
    attn_out = proj(attn_vec, params["w_o_t"])

    if pre_lnorm:
        return in_vec + attn_out
    return layer_norm(in_vec + attn_out)


# --------------------------------------------------------------------------

if __name__ == "__main__":
    n_head, d_head, d_model = 4, 8, 32
    bsz = 2

    root = jax.random.PRNGKey(0)
    kp, kd = jax.random.split(root)
    params = init_params(kp, n_head, d_model, d_head)

    def make_inputs(qlen, mlen):
        ks = jax.random.split(jax.random.fold_in(kd, qlen * 131 + mlen), 6)
        klen = qlen + mlen
        in_vec = jax.random.normal(ks[0], (qlen, bsz, d_model), jnp.float32)
        cross_vec = jax.random.normal(ks[1], (qlen, bsz, d_model), jnp.float32)
        r = jax.random.normal(ks[2], (klen, d_model), jnp.float32)
        r_w_bias = 0.1 * jax.random.normal(ks[3], (n_head, d_head), jnp.float32)
        r_r_bias = 0.1 * jax.random.normal(ks[4], (n_head, d_head), jnp.float32)
        mems = (jax.random.normal(ks[5], (mlen, bsz, d_model), jnp.float32)
                if mlen else None)
        return in_vec, cross_vec, r, r_w_bias, r_r_bias, mems

    def check(name, *, qlen=8, mlen=0, use_mask=False, pre_lnorm=False,
              compute_dtype=jnp.float32, attn_q_tile=128, atol=2e-3, rtol=2e-3):
        in_vec, cross_vec, r, r_w_bias, r_r_bias, mems = make_inputs(qlen, mlen)
        attn_mask = None
        if use_mask:   # Transformer-XL style 3-D causal mask
            attn_mask = jnp.triu(
                jnp.ones((qlen, qlen + mlen), jnp.bool_), k=1 + mlen)[:, :, None]
        out = rel_partial_learnable_cross_attn(
            in_vec, cross_vec, r, r_w_bias, r_r_bias, params,
            n_head=n_head, d_head=d_head, attn_mask=attn_mask, mems=mems,
            pre_lnorm=pre_lnorm, compute_dtype=compute_dtype,
            attn_q_tile=attn_q_tile)
        out = jax.block_until_ready(out)
        ref = reference(in_vec, cross_vec, r, r_w_bias, r_r_bias, params,
                        n_head=n_head, d_head=d_head, attn_mask=attn_mask,
                        mems=mems, pre_lnorm=pre_lnorm)
        assert out.shape == (qlen, bsz, d_model)
        out32 = out.astype(jnp.float32)
        err = float(jnp.max(jnp.abs(out32 - ref)))
        assert jnp.allclose(out32, ref, atol=atol, rtol=rtol), \
            f"{name}: max abs err = {err}"

    # (a) post-LN, no mask, no memory (f32 exactness path, incl. rel-shift wrap)
    check("base_f32")
    # (b) pre-LN path (exercises the no-residual LayerNorm kernel)
    check("pre_lnorm_f32", pre_lnorm=True)
    # (c) memory + 3-D causal mask (Transformer-XL style)
    check("mems_mask_f32", mlen=4, use_mask=True)
    # (d) multi-query-tile path (cross-tile rel-shift wrap, unmasked)
    check("qtile_f32", qlen=32, attn_q_tile=16)
    # (e) default bf16 MXU-operand path
    check("base_bf16", compute_dtype=jnp.bfloat16, atol=5e-2, rtol=5e-2)
    check("mems_mask_bf16", mlen=4, use_mask=True,
          compute_dtype=jnp.bfloat16, atol=5e-2, rtol=5e-2)

    print("KERNEL_OK")
</pallas_src>

<mosaic_0001>
module attributes {stable_mosaic.version = 11 : i64} {
  func.func @_matmul_kernel(%arg0: i32, %arg1: i32, %arg2: i32, %arg3: memref<128x32xf32, #tpu.memory_space<vmem>>, %arg4: memref<32x32xf32, #tpu.memory_space<vmem>>, %arg5: memref<128x32xf32, #tpu.memory_space<vmem>>, %arg6: memref<128x32xf32, #tpu.memory_space<vmem>>) attributes {dimension_semantics = [#tpu.dimension_semantics<parallel>, #tpu.dimension_semantics<parallel>, #tpu.dimension_semantics<arbitrary>], iteration_bounds = array<i64: 1, 1, 1>, scalar_prefetch = 0 : i64, scratch_operands = 1 : i64, tpu.core_type = #tpu.core_type<tc>, window_params = [{transform_indices = @transform_0, window_bounds = array<i64: 128, 32>}, {transform_indices = @transform_1, window_bounds = array<i64: 32, 32>}, {transform_indices = @transform_2, window_bounds = array<i64: 128, 32>}]} {
    %c0_i32 = arith.constant 0 : i32
    %0 = arith.cmpi eq, %arg2, %c0_i32 : i32
    %1 = arith.extui %0 : i1 to i32
    %c0_i32_0 = arith.constant 0 : i32
    %2 = arith.cmpi ne, %1, %c0_i32_0 : i32
    scf.if %2 {
      %cst_10 = arith.constant 0.000000e+00 : f32
      %12 = vector.broadcast %cst_10 : f32 to vector<128x32xf32>
      %c0_11 = arith.constant 0 : index
      %c0_12 = arith.constant 0 : index
      %13 = vector.load %arg6[%c0_11, %c0_12] : memref<128x32xf32, #tpu.memory_space<vmem>>, vector<128x32xf32>
      tpu.vector_store %arg6[%c0_11, %c0_12], %12 {strides = array<i32>} : memref<128x32xf32, #tpu.memory_space<vmem>>, vector<128x32xf32>,
    } else {
    }
    %c0 = arith.constant 0 : index
    %c0_1 = arith.constant 0 : index
    %3 = vector.load %arg6[%c0, %c0_1] : memref<128x32xf32, #tpu.memory_space<vmem>>, vector<128x32xf32>
    %c0_2 = arith.constant 0 : index
    %c0_3 = arith.constant 0 : index
    %4 = vector.load %arg3[%c0_2, %c0_3] : memref<128x32xf32, #tpu.memory_space<vmem>>, vector<128x32xf32>
    %c0_4 = arith.constant 0 : index
    %c0_5 = arith.constant 0 : index
    %5 = vector.load %arg4[%c0_4, %c0_5] : memref<32x32xf32, #tpu.memory_space<vmem>>, vector<32x32xf32>
    %cst = arith.constant dense<0.000000e+00> : vector<128x32xf32>
    %6 = tpu.matmul %4, %5, %cst {dimension_numbers = #tpu.dot_dimension_numbers<[1], [0], [0], [1], [0, 0, 1, 1], [], []>} : vector<128x32xf32>, vector<32x32xf32>, vector<128x32xf32> -> vector<128x32xf32>
    %7 = arith.addf %3, %6 : vector<128x32xf32>
    %c0_6 = arith.constant 0 : index
    %c0_7 = arith.constant 0 : index
    %8 = vector.load %arg6[%c0_6, %c0_7] : memref<128x32xf32, #tpu.memory_space<vmem>>, vector<128x32xf32>
    tpu.vector_store %arg6[%c0_6, %c0_7], %7 {strides = array<i32>} : memref<128x32xf32, #tpu.memory_space<vmem>>, vector<128x32xf32>,
    %c0_i32_8 = arith.constant 0 : i32
    %9 = arith.cmpi eq, %arg2, %c0_i32_8 : i32
    %10 = arith.extui %9 : i1 to i32
    %c0_i32_9 = arith.constant 0 : i32
    %11 = arith.cmpi ne, %10, %c0_i32_9 : i32
    scf.if %11 {
      %c0_10 = arith.constant 0 : index
      %c0_11 = arith.constant 0 : index
      %12 = vector.load %arg6[%c0_10, %c0_11] : memref<128x32xf32, #tpu.memory_space<vmem>>, vector<128x32xf32>
      %c0_12 = arith.constant 0 : index
      %c0_13 = arith.constant 0 : index
      %13 = vector.load %arg5[%c0_12, %c0_13] : memref<128x32xf32, #tpu.memory_space<vmem>>, vector<128x32xf32>
      tpu.vector_store %arg5[%c0_12, %c0_13], %12 {strides = array<i32>} : memref<128x32xf32, #tpu.memory_space<vmem>>, vector<128x32xf32>,
    } else {
    }
    return
  }
  func.func @transform_0(%arg0: i32, %arg1: i32, %arg2: i32) -> (i32, i32) {
    %c0_i32 = arith.constant 0 : i32
    return %arg0, %arg2 : i32, i32
  }
  func.func @transform_1(%arg0: i32, %arg1: i32, %arg2: i32) -> (i32, i32) {
    %c0_i32 = arith.constant 0 : i32
    return %arg2, %arg1 : i32, i32
  }
  func.func @transform_2(%arg0: i32, %arg1: i32, %arg2: i32) -> (i32, i32) {
    %c0_i32 = arith.constant 0 : i32
    return %arg0, %arg1 : i32, i32
  }
}

</mosaic_0001>

<llo_original>
// kernel: tpu_custom_call.1
$region0: #{tpu_custom_call.1}
  #allocation0 [shape = 'u32[]', space=smem, size = 0x4, offset = 0x4, fixed_abs, tag = 'smem constant byte address 0x4 - core index']
  #allocation1 [shape = 'u32[144,128]{1,0:T(1,128)}', space=vmem, size = 0x12000, scoped, tag = 'internal scratch']
  #allocation2 [shape = 'f32[128,32]{1,0:T(8,128)}', space=vmem, size = 0x10000, scoped, tag = 'scratch operand']
  %s0 = inlined_call_operand.vmem [shape: f32[128,32], index: 0, kind: input, shape index: {}]
  %s1 = inlined_call_operand.vmem [shape: f32[32,32], index: 1, kind: input, shape index: {}]
  %s2 = inlined_call_operand.vmem [shape: f32[128,32], index: 2, kind: output, shape index: {}]
  %s3 = sld [smem:[#allocation0]]
  $region26: #{tpu_custom_call.1} parent=0
    _
  %s5 = ssub.s32 1, %s3
  %s6 = scalar_select 0, %s5, %s3
  // Predicated region
  $region2: #{tpu_custom_call.1} parent=0 // pred_check
    _
  $region3: #{tpu_custom_call.1} parent=0 // pred_check_branch
    %8 = sbr.rel (0) target = $region5
  $region4: #{tpu_custom_call.1} parent=0 // pred_region
    _
  $region5: #{tpu_custom_call.1} parent=0 // pred_fallthru
    _
  // Predicated region
  $region6: #{tpu_custom_call.1} parent=0 // pred_check
    _
  $region7: #{tpu_custom_call.1} parent=0 // pred_check_branch
    %10 = sbr.rel (0) target = $region9
  $region8: #{tpu_custom_call.1} parent=0 // pred_region
    _
  $region9: #{tpu_custom_call.1} parent=0 // pred_fallthru
    _
  %p11 = scmp.eq.s32.totalorder 0, 0
  // Predicated region
  $region10: #{tpu_custom_call.1} parent=0 // pred_check
    %p12 = pneg %p11
  $region11: #{tpu_custom_call.1} parent=0 // pred_check_branch
    %14 = sbr.rel (%p12) target = $region13
  $region12: #{tpu_custom_call.1} parent=0 // pred_region
    %vm15 = vcmask 261120
    %16 = vst.msk [vmem:[#allocation2] sm:$0xff] %vm15, 0.0
    %17 = vst.msk [vmem:[#allocation2 + $0x8] sm:$0xff] %vm15, 0.0
    %18 = vst.msk [vmem:[#allocation2 + $0x10] sm:$0xff] %vm15, 0.0
    %19 = vst.msk [vmem:[#allocation2 + $0x18] sm:$0xff] %vm15, 0.0
    %20 = vst.msk [vmem:[#allocation2 + $0x20] sm:$0xff] %vm15, 0.0
    %21 = vst.msk [vmem:[#allocation2 + $0x28] sm:$0xff] %vm15, 0.0
    %22 = vst.msk [vmem:[#allocation2 + $0x30] sm:$0xff] %vm15, 0.0
    %23 = vst.msk [vmem:[#allocation2 + $0x38] sm:$0xff] %vm15, 0.0
    %24 = vst.msk [vmem:[#allocation2 + $0x40] sm:$0xff] %vm15, 0.0
    %25 = vst.msk [vmem:[#allocation2 + $0x48] sm:$0xff] %vm15, 0.0
    %26 = vst.msk [vmem:[#allocation2 + $0x50] sm:$0xff] %vm15, 0.0
    %27 = vst.msk [vmem:[#allocation2 + $0x58] sm:$0xff] %vm15, 0.0
    %28 = vst.msk [vmem:[#allocation2 + $0x60] sm:$0xff] %vm15, 0.0
    %29 = vst.msk [vmem:[#allocation2 + $0x68] sm:$0xff] %vm15, 0.0
    %30 = vst.msk [vmem:[#allocation2 + $0x70] sm:$0xff] %vm15, 0.0
    %31 = vst.msk [vmem:[#allocation2 + $0x78] sm:$0xff] %vm15, 0.0
  $region13: #{tpu_custom_call.1} parent=0 // pred_fallthru
    _
  %v32 = vld [vmem:[#allocation2] sm:$0xff]
  %v33 = vld [vmem:[#allocation2 + $0x8] sm:$0xff]
  %v34 = vld [vmem:[#allocation2 + $0x10] sm:$0xff]
  %v35 = vld [vmem:[#allocation2 + $0x18] sm:$0xff]
  %v36 = vld [vmem:[#allocation2 + $0x20] sm:$0xff]
  %v37 = vld [vmem:[#allocation2 + $0x28] sm:$0xff]
  %v38 = vld [vmem:[#allocation2 + $0x30] sm:$0xff]
  %v39 = vld [vmem:[#allocation2 + $0x38] sm:$0xff]
  %v40 = vld [vmem:[#allocation2 + $0x40] sm:$0xff]
  %v41 = vld [vmem:[#allocation2 + $0x48] sm:$0xff]
  %v42 = vld [vmem:[#allocation2 + $0x50] sm:$0xff]
  %v43 = vld [vmem:[#allocation2 + $0x58] sm:$0xff]
  %v44 = vld [vmem:[#allocation2 + $0x60] sm:$0xff]
  %v45 = vld [vmem:[#allocation2 + $0x68] sm:$0xff]
  %v46 = vld [vmem:[#allocation2 + $0x70] sm:$0xff]
  %v47 = vld [vmem:[#allocation2 + $0x78] sm:$0xff]
  %v48 = vld [vmem:[%s0] sm:$0xff]
  %v49 = vld [vmem:[%s0 + $0x8] sm:$0xff]
  %v50 = vld [vmem:[%s0 + $0x10] sm:$0xff]
  %v51 = vld [vmem:[%s0 + $0x18] sm:$0xff]
  %v52 = vld [vmem:[%s0 + $0x20] sm:$0xff]
  %v53 = vld [vmem:[%s0 + $0x28] sm:$0xff]
  %v54 = vld [vmem:[%s0 + $0x30] sm:$0xff]
  %v55 = vld [vmem:[%s0 + $0x38] sm:$0xff]
  %v56 = vld [vmem:[%s0 + $0x40] sm:$0xff]
  %v57 = vld [vmem:[%s0 + $0x48] sm:$0xff]
  %v58 = vld [vmem:[%s0 + $0x50] sm:$0xff]
  %v59 = vld [vmem:[%s0 + $0x58] sm:$0xff]
  %v60 = vld [vmem:[%s0 + $0x60] sm:$0xff]
  %v61 = vld [vmem:[%s0 + $0x68] sm:$0xff]
  %v62 = vld [vmem:[%s0 + $0x70] sm:$0xff]
  %v63 = vld [vmem:[%s0 + $0x78] sm:$0xff]
  %v64 = vld [vmem:[%s1] sm:$0xff]
  %v65 = vld [vmem:[%s1 + $0x8] sm:$0xff]
  %v66 = vld [vmem:[%s1 + $0x10] sm:$0xff]
  %v67 = vld [vmem:[%s1 + $0x18] sm:$0xff]
  %vm68 = vcmask 261120
  %v70 = vsel %vm68, %v48, 0
  %v73 = vsel %vm68, %v49, 0
  %v76 = vsel %vm68, %v50, 0
  %v79 = vsel %vm68, %v51, 0
  %v82 = vsel %vm68, %v52, 0
  %v85 = vsel %vm68, %v53, 0
  %v88 = vsel %vm68, %v54, 0
  %v91 = vsel %vm68, %v55, 0
  %v94 = vsel %vm68, %v56, 0
  %v97 = vsel %vm68, %v57, 0
  %v100 = vsel %vm68, %v58, 0
  %v103 = vsel %vm68, %v59, 0
  %v106 = vsel %vm68, %v60, 0
  %v109 = vsel %vm68, %v61, 0
  %v112 = vsel %vm68, %v62, 0
  %v115 = vsel %vm68, %v63, 0
  %117 = vmatprep.subr.mxu0 0.0
  %118 = vmatpush1.msra.mxu0 %v64
  %119 = vmatprep.subr.mxu0 0.0
  %120 = vmatpush1.msra.mxu0 %v65
  %121 = vmatprep.subr.mxu0 0.0
  %122 = vmatpush1.msra.mxu0 %v66
  %123 = vmatprep.subr.mxu0 0.0
  %124 = vmatpush1.msra.mxu0 %v67
  %125 = vmatprep.subr.mxu0 0.0
  %126 = vmatpush1.msra.mxu0 0.0
  %127 = vmatprep.subr.mxu0 0.0
  %128 = vmatpush1.msra.mxu0 0.0
  %129 = vmatprep.subr.mxu0 0.0
  %130 = vmatpush1.msra.mxu0 0.0
  %131 = vmatprep.subr.mxu0 0.0
  %132 = vmatpush1.msra.mxu0 0.0
  %133 = vmatprep.subr.mxu0 0.0
  %134 = vmatpush1.msra.mxu0 0.0
  %135 = vmatprep.subr.mxu0 0.0
  %136 = vmatpush1.msra.mxu0 0.0
  %137 = vmatprep.subr.mxu0 0.0
  %138 = vmatpush1.msra.mxu0 0.0
  %139 = vmatprep.subr.mxu0 0.0
  %140 = vmatpush1.msra.mxu0 0.0
  %141 = vmatprep.subr.mxu0 0.0
  %142 = vmatpush1.msra.mxu0 0.0
  %143 = vmatprep.subr.mxu0 0.0
  %144 = vmatpush1.msra.mxu0 0.0
  %145 = vmatprep.subr.mxu0 0.0
  %146 = vmatpush1.msra.mxu0 0.0
  %147 = vmatprep.subr.mxu0 0.0
  %148 = vmatpush1.msra.mxu0 0.0
  %149 = vmatprep.subr.mxu0 0.0
  %150 = vmatpush1.msra.mxu0 0.0
  %151 = vmatprep.subr.mxu0 0.0
  %152 = vmatpush1.msra.mxu0 0.0
  %153 = vmatprep.subr.mxu0 0.0
  %154 = vmatpush1.msra.mxu0 0.0
  %155 = vmatprep.subr.mxu0 0.0
  %156 = vmatpush1.msra.mxu0 0.0
  %157 = vmatprep.subr.mxu0 0.0
  %158 = vmatpush1.msra.mxu0 0.0
  %159 = vmatprep.subr.mxu0 0.0
  %160 = vmatpush1.msra.mxu0 0.0
  %161 = vmatprep.subr.mxu0 0.0
  %162 = vmatpush1.msra.mxu0 0.0
  %163 = vmatprep.subr.mxu0 0.0
  %164 = vmatpush1.msra.mxu0 0.0
  %165 = vmatprep.subr.mxu0 0.0
  %166 = vmatpush1.msra.mxu0 0.0
  %167 = vmatprep.subr.mxu0 0.0
  %168 = vmatpush1.msra.mxu0 0.0
  %169 = vmatprep.subr.mxu0 0.0
  %170 = vmatpush1.msra.mxu0 0.0
  %171 = vmatprep.subr.mxu0 0.0
  %172 = vmatpush1.msra.mxu0 0.0
  %173 = vmatprep.subr.mxu0 0.0
  %174 = vmatpush1.msra.mxu0 0.0
  %175 = vmatprep.subr.mxu0 0.0
  %176 = vmatpush1.msra.mxu0 0.0
  %177 = vmatprep.subr.mxu0 0.0
  %178 = vmatpush1.msra.mxu0 0.0
  %179 = vmatprep.subr.mxu0 0.0
  %180 = vmatpush1.msra.mxu0 0.0
  %181 = vmatprep.mubr.f32.mxu0 0.0
  %182 = vmatmul.mubr.f32.gmra.mrb[0].mxu0 %v70
  %v183 = vpop.f32.mrb[0].mxu0
  %v184 = vadd.f32 0.0, %v183
  %v185 = vpop.f32.mrb[0].mxu0
  %186 = vmatprep.mubr.f32.mxu0 0.0
  %187 = vmatmul.mubr.f32.gmra.mrb[0].mxu0 %v73
  %v188 = vpop.f32.mrb[0].mxu0
  %v189 = vadd.f32 0.0, %v188
  %v190 = vpop.f32.mrb[0].mxu0
  %191 = vmatprep.mubr.f32.mxu0 0.0
  %192 = vmatmul.mubr.f32.gmra.mrb[0].mxu0 %v76
  %v193 = vpop.f32.mrb[0].mxu0
  %v194 = vadd.f32 0.0, %v193
  %v195 = vpop.f32.mrb[0].mxu0
  %196 = vmatprep.mubr.f32.mxu0 0.0
  %197 = vmatmul.mubr.f32.gmra.mrb[0].mxu0 %v79
  %v198 = vpop.f32.mrb[0].mxu0
  %v199 = vadd.f32 0.0, %v198
  %v200 = vpop.f32.mrb[0].mxu0
  %201 = vmatprep.mubr.f32.mxu0 0.0
  %202 = vmatmul.mubr.f32.gmra.mrb[0].mxu0 %v82
  %v203 = vpop.f32.mrb[0].mxu0
  %v204 = vadd.f32 0.0, %v203
  %v205 = vpop.f32.mrb[0].mxu0
  %206 = vmatprep.mubr.f32.mxu0 0.0
  %207 = vmatmul.mubr.f32.gmra.mrb[0].mxu0 %v85
  %v208 = vpop.f32.mrb[0].mxu0
  %v209 = vadd.f32 0.0, %v208
  %v210 = vpop.f32.mrb[0].mxu0
  %211 = vmatprep.mubr.f32.mxu0 0.0
  %212 = vmatmul.mubr.f32.gmra.mrb[0].mxu0 %v88
  %v213 = vpop.f32.mrb[0].mxu0
  %v214 = vadd.f32 0.0, %v213
  %v215 = vpop.f32.mrb[0].mxu0
  %216 = vmatprep.mubr.f32.mxu0 0.0
  %217 = vmatmul.mubr.f32.gmra.mrb[0].mxu0 %v91
  %v218 = vpop.f32.mrb[0].mxu0
  %v219 = vadd.f32 0.0, %v218
  %v220 = vpop.f32.mrb[0].mxu0
  %221 = vmatprep.mubr.f32.mxu0 0.0
  %222 = vmatmul.mubr.f32.gmra.mrb[0].mxu0 %v94
  %v223 = vpop.f32.mrb[0].mxu0
  %v224 = vadd.f32 0.0, %v223
  %v225 = vpop.f32.mrb[0].mxu0
  %226 = vmatprep.mubr.f32.mxu0 0.0
  %227 = vmatmul.mubr.f32.gmra.mrb[0].mxu0 %v97
  %v228 = vpop.f32.mrb[0].mxu0
  %v229 = vadd.f32 0.0, %v228
  %v230 = vpop.f32.mrb[0].mxu0
  %231 = vmatprep.mubr.f32.mxu0 0.0
  %232 = vmatmul.mubr.f32.gmra.mrb[0].mxu0 %v100
  %v233 = vpop.f32.mrb[0].mxu0
  %v234 = vadd.f32 0.0, %v233
  %v235 = vpop.f32.mrb[0].mxu0
  %236 = vmatprep.mubr.f32.mxu0 0.0
  %237 = vmatmul.mubr.f32.gmra.mrb[0].mxu0 %v103
  %v238 = vpop.f32.mrb[0].mxu0
  %v239 = vadd.f32 0.0, %v238
  %v240 = vpop.f32.mrb[0].mxu0
  %241 = vmatprep.mubr.f32.mxu0 0.0
  %242 = vmatmul.mubr.f32.gmra.mrb[0].mxu0 %v106
  %v243 = vpop.f32.mrb[0].mxu0
  %v244 = vadd.f32 0.0, %v243
  %v245 = vpop.f32.mrb[0].mxu0
  %246 = vmatprep.mubr.f32.mxu0 0.0
  %247 = vmatmul.mubr.f32.gmra.mrb[0].mxu0 %v109
  %v248 = vpop.f32.mrb[0].mxu0
  %v249 = vadd.f32 0.0, %v248
  %v250 = vpop.f32.mrb[0].mxu0
  %251 = vmatprep.mubr.f32.mxu0 0.0
  %252 = vmatmul.mubr.f32.gmra.mrb[0].mxu0 %v112
  %v253 = vpop.f32.mrb[0].mxu0
  %v254 = vadd.f32 0.0, %v253
  %v255 = vpop.f32.mrb[0].mxu0
  %256 = vmatprep.mubr.f32.mxu0 0.0
  %257 = vmatmul.mubr.f32.gmra.mrb[0].mxu0 %v115
  %v258 = vpop.f32.mrb[0].mxu0
  %v259 = vadd.f32 0.0, %v258
  %v260 = vpop.f32.mrb[0].mxu0
  %261 = vdwg.mxu0
  %v262 = vadd.f32 %v32, %v184
  %v263 = vadd.f32 %v33, %v189
  %v264 = vadd.f32 %v34, %v194
  %v265 = vadd.f32 %v35, %v199
  %v266 = vadd.f32 %v36, %v204
  %v267 = vadd.f32 %v37, %v209
  %v268 = vadd.f32 %v38, %v214
  %v269 = vadd.f32 %v39, %v219
  %v270 = vadd.f32 %v40, %v224
  %v271 = vadd.f32 %v41, %v229
  %v272 = vadd.f32 %v42, %v234
  %v273 = vadd.f32 %v43, %v239
  %v274 = vadd.f32 %v44, %v244
  %v275 = vadd.f32 %v45, %v249
  %v276 = vadd.f32 %v46, %v254
  %v277 = vadd.f32 %v47, %v259
  %278 = vst.msk [vmem:[#allocation2] sm:$0xff] %vm68, %v262
  %279 = vst.msk [vmem:[#allocation2 + $0x8] sm:$0xff] %vm68, %v263
  %280 = vst.msk [vmem:[#allocation2 + $0x10] sm:$0xff] %vm68, %v264
  %281 = vst.msk [vmem:[#allocation2 + $0x18] sm:$0xff] %vm68, %v265
  %282 = vst.msk [vmem:[#allocation2 + $0x20] sm:$0xff] %vm68, %v266
  %283 = vst.msk [vmem:[#allocation2 + $0x28] sm:$0xff] %vm68, %v267
  %284 = vst.msk [vmem:[#allocation2 + $0x30] sm:$0xff] %vm68, %v268
  %285 = vst.msk [vmem:[#allocation2 + $0x38] sm:$0xff] %vm68, %v269
  %286 = vst.msk [vmem:[#allocation2 + $0x40] sm:$0xff] %vm68, %v270
  %287 = vst.msk [vmem:[#allocation2 + $0x48] sm:$0xff] %vm68, %v271
  %288 = vst.msk [vmem:[#allocation2 + $0x50] sm:$0xff] %vm68, %v272
  %289 = vst.msk [vmem:[#allocation2 + $0x58] sm:$0xff] %vm68, %v273
  %290 = vst.msk [vmem:[#allocation2 + $0x60] sm:$0xff] %vm68, %v274
  %291 = vst.msk [vmem:[#allocation2 + $0x68] sm:$0xff] %vm68, %v275
  %292 = vst.msk [vmem:[#allocation2 + $0x70] sm:$0xff] %vm68, %v276
  %293 = vst.msk [vmem:[#allocation2 + $0x78] sm:$0xff] %vm68, %v277
  // Predicated region
  $region14: #{tpu_custom_call.1} parent=0 // pred_check
    %p294 = pneg %p11
  $region15: #{tpu_custom_call.1} parent=0 // pred_check_branch
    %296 = sbr.rel (%p294) target = $region17
  $region16: #{tpu_custom_call.1} parent=0 // pred_region
    %v297 = vld [vmem:[#allocation2] sm:$0xff]
    %v298 = vld [vmem:[#allocation2 + $0x8] sm:$0xff]
    %v299 = vld [vmem:[#allocation2 + $0x10] sm:$0xff]
    %v300 = vld [vmem:[#allocation2 + $0x18] sm:$0xff]
    %v301 = vld [vmem:[#allocation2 + $0x20] sm:$0xff]
    %v302 = vld [vmem:[#allocation2 + $0x28] sm:$0xff]
    %v303 = vld [vmem:[#allocation2 + $0x30] sm:$0xff]
    %v304 = vld [vmem:[#allocation2 + $0x38] sm:$0xff]
    %v305 = vld [vmem:[#allocation2 + $0x40] sm:$0xff]
    %v306 = vld [vmem:[#allocation2 + $0x48] sm:$0xff]
    %v307 = vld [vmem:[#allocation2 + $0x50] sm:$0xff]
    %v308 = vld [vmem:[#allocation2 + $0x58] sm:$0xff]
    %v309 = vld [vmem:[#allocation2 + $0x60] sm:$0xff]
    %v310 = vld [vmem:[#allocation2 + $0x68] sm:$0xff]
    %v311 = vld [vmem:[#allocation2 + $0x70] sm:$0xff]
    %v312 = vld [vmem:[#allocation2 + $0x78] sm:$0xff]
    %313 = vst.msk [vmem:[%s2] sm:$0xff] %vm68, %v297
    %314 = vst.msk [vmem:[%s2 + $0x8] sm:$0xff] %vm68, %v298
    %315 = vst.msk [vmem:[%s2 + $0x10] sm:$0xff] %vm68, %v299
    %316 = vst.msk [vmem:[%s2 + $0x18] sm:$0xff] %vm68, %v300
    %317 = vst.msk [vmem:[%s2 + $0x20] sm:$0xff] %vm68, %v301
    %318 = vst.msk [vmem:[%s2 + $0x28] sm:$0xff] %vm68, %v302
    %319 = vst.msk [vmem:[%s2 + $0x30] sm:$0xff] %vm68, %v303
    %320 = vst.msk [vmem:[%s2 + $0x38] sm:$0xff] %vm68, %v304
    %321 = vst.msk [vmem:[%s2 + $0x40] sm:$0xff] %vm68, %v305
    %322 = vst.msk [vmem:[%s2 + $0x48] sm:$0xff] %vm68, %v306
    %323 = vst.msk [vmem:[%s2 + $0x50] sm:$0xff] %vm68, %v307
    %324 = vst.msk [vmem:[%s2 + $0x58] sm:$0xff] %vm68, %v308
    %325 = vst.msk [vmem:[%s2 + $0x60] sm:$0xff] %vm68, %v309
    %326 = vst.msk [vmem:[%s2 + $0x68] sm:$0xff] %vm68, %v310
    %327 = vst.msk [vmem:[%s2 + $0x70] sm:$0xff] %vm68, %v311
    %328 = vst.msk [vmem:[%s2 + $0x78] sm:$0xff] %vm68, %v312
  $region17: #{tpu_custom_call.1} parent=0 // pred_fallthru
    _
  // Predicated region
  $region18: #{tpu_custom_call.1} parent=0 // pred_check
    _
  $region19: #{tpu_custom_call.1} parent=0 // pred_check_branch
    %330 = sbr.rel (0) target = $region21
  $region20: #{tpu_custom_call.1} parent=0 // pred_region
    _
  $region21: #{tpu_custom_call.1} parent=0 // pred_fallthru
    _
  // Predicated region
  $region22: #{tpu_custom_call.1} parent=0 // pred_check
    _
  $region23: #{tpu_custom_call.1} parent=0 // pred_check_branch
    %332 = sbr.rel (0) target = $region25
  $region24: #{tpu_custom_call.1} parent=0 // pred_region
    _
  $region25: #{tpu_custom_call.1} parent=0 // pred_fallthru
    _

</llo_original>
